<compile_context>
chip_gen: v5e
topology: v5e:2x2
jax: 0.10.0
libtpu: 0.0.40
codegen_flags: <defaults>
</compile_context>

<pallas_src>
import functools
import math

import jax
import jax.numpy as jnp
from jax.experimental import pallas as pl
from jax.experimental.pallas import tpu as pltpu


def _sinpos_kernel(tab_ref, x_ref, o_ref, *, tile_s: int):
    """tab_ref: (4, TF) f32 rows = [local_pos, inv_freq, phase, alpha] (tiled per column).
    x_ref / o_ref: (B, TF) blocks of the flattened (B, S*D) input/output."""
    t = pl.program_id(0)
    pos0 = (t * tile_s).astype(jnp.float32)              # absolute position offset of tile
    angle = (tab_ref[0, :] + pos0) * tab_ref[1, :] + tab_ref[2, :]
    pe_row = tab_ref[3, :] * jnp.sin(angle)               # alpha * pe, shape (TF,)
    o_ref[...] = (x_ref[...].astype(jnp.float32) + pe_row[None, :]).astype(o_ref.dtype)


def _choose_tiling(B, S, D, max_block_bytes):
    """Pick tile_s so one (B, tile_s*D) f32 block (with 8-sublane padding) is
    ~max_block_bytes, the flattened tile width is a multiple of 128 lanes, and
    tile boundaries align with position boundaries."""
    total_flat = S * D
    padded_b = ((B + 7) // 8) * 8
    budget_elems = max(1, max_block_bytes // (4 * padded_b))
    if total_flat <= budget_elems:
        return S, total_flat, 1                           # single full block
    step = 128 // math.gcd(D, 128)                        # positions per 128-lane unit
    tile_s = max(step, (budget_elems // D) // step * step)
    if tile_s >= S:
        return S, total_flat, 1
    return tile_s, tile_s * D, pl.cdiv(S, tile_s)
    # TODO(synk): for extremely large B with D not a multiple of 128 the minimum
    # aligned block may exceed the budget; a second batch grid axis would cover that.


def sinusoidal_positional_encoding(x: jax.Array, alpha: jax.Array,
                                   *, max_block_bytes: int = 2 << 20) -> jax.Array:
    """out = x + alpha * pe[:, :S];  x: (B, S, D), alpha: (D,)."""
    B, S, D = x.shape
    assert alpha.shape == (D,)
    tile_s, tile_flat, num_tiles = _choose_tiling(B, S, D, max_block_bytes)

    # Tiny per-column tables, computed once in the wrapper (no exp in-kernel).
    half_inv = jnp.exp(jnp.arange(0, D, 2, dtype=jnp.float32)
                       * (-math.log(10000.0) / D))              # (ceil(D/2),)
    inv_d = jnp.repeat(half_inv, 2)[:D]                          # column j -> inv_freq[j//2]
    phase_d = jnp.tile(jnp.array([0.0, math.pi / 2], jnp.float32),
                       (D + 1) // 2)[:D]                         # even -> sin, odd -> cos
    local_pos = (jnp.arange(tile_flat, dtype=jnp.int32) // D).astype(jnp.float32)
    tables = jnp.stack([
        local_pos,
        jnp.tile(inv_d, tile_s)[:tile_flat],
        jnp.tile(phase_d, tile_s)[:tile_flat],
        jnp.tile(alpha.astype(jnp.float32), tile_s)[:tile_flat],
    ], axis=0)                                                   # (4, tile_flat) f32

    x2 = x.reshape(B, S * D)
    kernel = functools.partial(_sinpos_kernel, tile_s=tile_s)
    out2 = pl.pallas_call(
        kernel,
        out_shape=jax.ShapeDtypeStruct((B, S * D), x.dtype),
        grid_spec=pltpu.PrefetchScalarGridSpec(
            num_scalar_prefetch=0,
            grid=(num_tiles,),
            in_specs=[
                pl.BlockSpec((4, tile_flat), lambda t: (0, 0)),   # resident table
                pl.BlockSpec((B, tile_flat), lambda t: (0, t)),
            ],
            out_specs=pl.BlockSpec((B, tile_flat), lambda t: (0, t)),
        ),
        compiler_params=pltpu.CompilerParams(
            dimension_semantics=("parallel",)),
    )(tables, x2)
    return out2.reshape(B, S, D)


def _reference(x, alpha, max_len=5000):
    # pure-JAX reproduction of the PyTorch module
    B, S, D = x.shape
    pos = jnp.arange(max_len, dtype=jnp.float32)[:, None]
    div = jnp.exp(jnp.arange(0, D, 2, dtype=jnp.float32) * (-math.log(10000.0) / D))
    pe = jnp.zeros((max_len, D), jnp.float32)
    pe = pe.at[:, 0::2].set(jnp.sin(pos * div))
    pe = pe.at[:, 1::2].set(jnp.cos(pos * div))
    return x + alpha * pe[None, :S]


if __name__ == "__main__":
    key = jax.random.PRNGKey(0)
    init_std = 1e-5
    k1, k2, k3, k4 = jax.random.split(key, 4)

    # Test 1: module-sized small shapes (single lane-dense block).
    B, S, D = 2, 16, 32
    x = jax.random.normal(k1, (B, S, D), dtype=jnp.float32)
    alpha = init_std * jax.random.normal(k2, (D,), dtype=jnp.float32)
    out = jax.block_until_ready(sinusoidal_positional_encoding(x, alpha))
    ref = _reference(x, alpha)
    assert out.shape == ref.shape and out.dtype == ref.dtype
    assert jnp.allclose(out, ref, atol=1e-5, rtol=1e-5), "mismatch vs reference (test 1)"

    # Test 2: multi-tile grid with a non-dividing (masked) tail block.
    B2, S2, D2 = 3, 50, 64
    x2 = jax.random.normal(k3, (B2, S2, D2), dtype=jnp.float32)
    alpha2 = init_std * jax.random.normal(k4, (D2,), dtype=jnp.float32)
    out2 = jax.block_until_ready(
        sinusoidal_positional_encoding(x2, alpha2, max_block_bytes=1 << 16))
    ref2 = _reference(x2, alpha2)
    assert jnp.allclose(out2, ref2, atol=1e-5, rtol=1e-5), "mismatch vs reference (test 2)"

    print("KERNEL_OK")
</pallas_src>

<mosaic_0001>
module attributes {stable_mosaic.version = 11 : i64} {
  func.func @_sinpos_kernel(%arg0: i32, %arg1: memref<4x512xf32, #tpu.memory_space<vmem>>, %arg2: memref<2x512xf32, #tpu.memory_space<vmem>>, %arg3: memref<2x512xf32, #tpu.memory_space<vmem>>) attributes {dimension_semantics = [#tpu.dimension_semantics<parallel>], iteration_bounds = array<i64: 1>, scalar_prefetch = 0 : i64, scratch_operands = 0 : i64, tpu.core_type = #tpu.core_type<tc>, window_params = [{pipeline_mode = #tpu.pipeline_mode<synchronous>, transform_indices = @transform_0, window_bounds = array<i64: 4, 512>}, {transform_indices = @transform_1, window_bounds = array<i64: 2, 512>}, {transform_indices = @transform_2, window_bounds = array<i64: 2, 512>}]} {
    %c16_i32 = arith.constant 16 : i32
    %0 = arith.muli %arg0, %c16_i32 : i32
    %1 = arith.sitofp %0 : i32 to f32
    %c0 = arith.constant 0 : index
    %c0_0 = arith.constant 0 : index
    %2 = vector.load %arg1[%c0, %c0_0] : memref<4x512xf32, #tpu.memory_space<vmem>>, vector<1x512xf32>
    %3 = vector.shape_cast %2 : vector<1x512xf32> to vector<512xf32>
    %4 = vector.broadcast %1 : f32 to vector<512xf32>
    %5 = arith.addf %3, %4 : vector<512xf32>
    %c1 = arith.constant 1 : index
    %c0_1 = arith.constant 0 : index
    %6 = vector.load %arg1[%c1, %c0_1] : memref<4x512xf32, #tpu.memory_space<vmem>>, vector<1x512xf32>
    %7 = vector.shape_cast %6 : vector<1x512xf32> to vector<512xf32>
    %8 = arith.mulf %5, %7 : vector<512xf32>
    %c2 = arith.constant 2 : index
    %c0_2 = arith.constant 0 : index
    %9 = vector.load %arg1[%c2, %c0_2] : memref<4x512xf32, #tpu.memory_space<vmem>>, vector<1x512xf32>
    %10 = vector.shape_cast %9 : vector<1x512xf32> to vector<512xf32>
    %11 = arith.addf %8, %10 : vector<512xf32>
    %c3 = arith.constant 3 : index
    %c0_3 = arith.constant 0 : index
    %12 = vector.load %arg1[%c3, %c0_3] : memref<4x512xf32, #tpu.memory_space<vmem>>, vector<1x512xf32>
    %13 = vector.shape_cast %12 : vector<1x512xf32> to vector<512xf32>
    %14 = math.sin %11 : vector<512xf32>
    %15 = arith.mulf %13, %14 : vector<512xf32>
    %c0_4 = arith.constant 0 : index
    %c0_5 = arith.constant 0 : index
    %16 = vector.load %arg2[%c0_4, %c0_5] : memref<2x512xf32, #tpu.memory_space<vmem>>, vector<2x512xf32>
    %17 = vector.shape_cast %15 : vector<512xf32> to vector<1x512xf32>
    %18 = vector.broadcast %17 : vector<1x512xf32> to vector<2x512xf32>
    %19 = arith.addf %16, %18 : vector<2x512xf32>
    %c0_6 = arith.constant 0 : index
    %c0_7 = arith.constant 0 : index
    %20 = vector.load %arg3[%c0_6, %c0_7] : memref<2x512xf32, #tpu.memory_space<vmem>>, vector<2x512xf32>
    tpu.vector_store %arg3[%c0_6, %c0_7], %19 {strides = array<i32>} : memref<2x512xf32, #tpu.memory_space<vmem>>, vector<2x512xf32>,
    return
  }
  func.func @transform_0(%arg0: i32) -> (i32, i32) {
    %c0_i32 = arith.constant 0 : i32
    %c0_i32_0 = arith.constant 0 : i32
    %c0_i32_1 = arith.constant 0 : i32
    return %c0_i32, %c0_i32_0 : i32, i32
  }
  func.func @transform_1(%arg0: i32) -> (i32, i32) {
    %c0_i32 = arith.constant 0 : i32
    %c0_i32_0 = arith.constant 0 : i32
    return %c0_i32, %arg0 : i32, i32
  }
  func.func @transform_2(%arg0: i32) -> (i32, i32) {
    %c0_i32 = arith.constant 0 : i32
    %c0_i32_0 = arith.constant 0 : i32
    return %c0_i32, %arg0 : i32, i32
  }
}

</mosaic_0001>

<llo_original>
// kernel: tpu_custom_call.1
$region0: #{tpu_custom_call.1}
  #allocation0 [shape = 'u32[]', space=smem, size = 0x4, offset = 0x4, fixed_abs, tag = 'smem constant byte address 0x4 - core index']
  #allocation1 [shape = 'u32[72,128]{1,0:T(1,128)}', space=vmem, size = 0x9000, scoped, tag = 'internal scratch']
  %s0 = inlined_call_operand.hbm [shape: f32[4,512], index: 0, kind: input, shape index: {}]
  %s1 = inlined_call_operand.hbm [shape: f32[2,512], index: 1, kind: input, shape index: {}]
  %s2 = inlined_call_operand.hbm [shape: f32[2,512], index: 2, kind: output, shape index: {}]
  %s3 = sld [smem:[#allocation0]]
  $region26: #{tpu_custom_call.1} parent=0
    _
  %s5 = ssub.s32 1, %s3
  %s6 = scalar_select 0, %s5, %s3
  $region1: #{tpu_custom_call.1} parent=0
    #allocation2 [shape = 'u8[8192]{0}', space=vmem, size = 0x2000, scoped, tag = 'input window, operand 0, single buffered']
    #allocation3 [shape = 's32[1]{0}', space=sflag, size = 0x4, scoped, tag = 'scoped memory for tpu_custom_call.1']
    #allocation4 [shape = 's32[1]{0}', space=sflag, size = 0x4, scoped, tag = 'scoped memory for tpu_custom_call.1']
    #allocation5 [shape = 'u8[4096]{0}', space=vmem, size = 0x1000, scoped, tag = 'input window, operand 1, single buffered']
    #allocation6 [shape = 's32[1]{0}', space=sflag, size = 0x4, scoped, tag = 'scoped memory for tpu_custom_call.1']
    #allocation7 [shape = 'u8[4096]{0}', space=vmem, size = 0x1000, scoped, tag = 'output window, operand 0, single buffered']
    %7 = vsyncpa [#allocation3], 0
    %8 = vsyncpa [#allocation6], 0
    %9 = vsyncpa [#allocation4], 0
    // Predicated region
    $region2: #{tpu_custom_call.1} parent=1 // pred_check
      _
    $region3: #{tpu_custom_call.1} parent=1 // pred_check_branch
      %11 = sbr.rel (0) target = $region5
    $region4: #{tpu_custom_call.1} parent=1 // pred_region
      %13 = vsyncadd [#allocation3], 0
      %s15 = sshll.u32 %s0, 4
      %s16 = int_to_ptr.hbm [resolvable:$true] %s15
      %s17 = sshll.u32 [#allocation2], 4
      %s18 = int_to_ptr.vmem [resolvable:$true] %s17
      %20 = dma.hbm_to_vmem [thread:$0]  %s16, 256, %s18, [#allocation3]
    $region5: #{tpu_custom_call.1} parent=1 // pred_fallthru
      _
    // Predicated region
    $region6: #{tpu_custom_call.1} parent=1 // pred_check
      _
    $region7: #{tpu_custom_call.1} parent=1 // pred_check_branch
      %22 = sbr.rel (0) target = $region9
    $region8: #{tpu_custom_call.1} parent=1 // pred_region
      %24 = vsyncadd [#allocation6], 0
      %s26 = sshll.u32 %s1, 4
      %s27 = int_to_ptr.hbm [resolvable:$true] %s26
      %s28 = sshll.u32 [#allocation5], 4
      %s29 = int_to_ptr.vmem [resolvable:$true] %s28
      %31 = dma.hbm_to_vmem [thread:$0]  %s27, 128, %s29, [#allocation6]
    $region9: #{tpu_custom_call.1} parent=1 // pred_fallthru
      _
    // Predicated region
    $region10: #{tpu_custom_call.1} parent=1 // pred_check
      _
    $region11: #{tpu_custom_call.1} parent=1 // pred_check_branch
      %33 = sbr.rel (0) target = $region13
    $region12: #{tpu_custom_call.1} parent=1 // pred_region
      %35 = dma.done [#allocation3], 256
    $region13: #{tpu_custom_call.1} parent=1 // pred_fallthru
      _
    // Predicated region
    $region14: #{tpu_custom_call.1} parent=1 // pred_check
      _
    $region15: #{tpu_custom_call.1} parent=1 // pred_check_branch
      %37 = sbr.rel (0) target = $region17
    $region16: #{tpu_custom_call.1} parent=1 // pred_region
      %39 = dma.done [#allocation6], 128
    $region17: #{tpu_custom_call.1} parent=1 // pred_fallthru
      _
    %s40 = smul.u32 0, 16
    %s41 = scvt.s32.f32 %s40
    %v42 = vld [vmem:[#allocation2] ss:$4 sm:$0xf]
    %v43 = vstv %s41
    %v44 = vadd.f32 %v42, %v43
    %s45 = scalar_lea.vmem [#allocation2], 1
    %v46 = vld [vmem:[%s45] ss:$4 sm:$0xf]
    %v47 = vmul.f32 %v44, %v46
    %s48 = scalar_lea.vmem [#allocation2], 2
    %v49 = vld [vmem:[%s48] ss:$4 sm:$0xf]
    %v50 = vadd.f32 %v47, %v49
    %s51 = scalar_lea.vmem [#allocation2], 3
    %v52 = vld [vmem:[%s51] ss:$4 sm:$0xf]
    %v53 = vand.u32 2147483647, %v50
    %vm54 = vcmp.le.f32.partialorder %v53, 0.7853982
    %vm55 = vcmp.lt.s32.totalorder %v50, 0
    %v56 = vand.u32 %v50, 2139095040
    %v57 = vshrl.u32 %v56, 23
    %v58 = vsub.s32 %v57, 127
    %v59 = vand.u32 2147483647, %v50
    %v60 = vand.u32 %v59, 8388607
    %v61 = vor.u32 %v60, 8388608
    %v62 = vsub.s32 0, %v61
    %v63 = vadd.s32 %v58, 1
    %vm64 = vcmp.gt.s32.totalorder %v63, 0
    %v65 = vsel %vm64, %v63, 0
    %v66 = vshrl.u32 %v65, 5
    %v67 = vand.u32 %v65, 31
    %v68 = vsub.s32 32, %v67
    %v69 = vshrl.u32 683565275, %v68
    %v70 = vshll.u32 683565275, %v67
    %v71 = vshrl.u32 2475754826, %v68
    %v72 = vor.u32 %v70, %v71
    %v73 = vshll.u32 2475754826, %v67
    %v74 = vshrl.u32 2131351028, %v68
    %v75 = vor.u32 %v73, %v74
    %v76 = vshll.u32 2131351028, %v67
    %v77 = vshrl.u32 2102212464, %v68
    %v78 = vor.u32 %v76, %v77
    %v79 = vshll.u32 2102212464, %v67
    %v80 = vshrl.u32 920167782, %v68
    %v81 = vor.u32 %v79, %v80
    %v82 = vshll.u32 920167782, %v67
    %v83 = vshrl.u32 1326507024, %v68
    %v84 = vor.u32 %v82, %v83
    %vm85 = vcmp.lt.s32.totalorder %v66, 1
    %vm86 = vcmp.lt.s32.totalorder %v66, 2
    %vm87 = vcmp.lt.s32.totalorder %v66, 3
    %vm88 = vcmp.lt.s32.totalorder %v66, 4
    %v89 = vsel %vm85, %v69, %v72
    %v90 = vsel %vm88, %v78, 2102212464
    %v91 = vsel %vm87, %v75, %v90
    %v92 = vsel %vm86, %v89, %v91
    %v93 = vsel %vm85, %v72, %v75
    %v94 = vsel %vm88, %v81, 920167782
    %v95 = vsel %vm87, %v78, %v94
    %v96 = vsel %vm86, %v93, %v95
    %v97 = vsel %vm85, %v75, %v78
    %v98 = vsel %vm88, %v84, 1326507024
    %v99 = vsel %vm87, %v81, %v98
    %v100 = vsel %vm86, %v97, %v99
    %v101 = vshll.u32 %v61, 8
    %v102 = vand.u32 %v101, 65535
    %v103 = vshrl.u32 %v101, 16
    %v104 = vand.u32 %v100, 65535
    %v105 = vshrl.u32 %v100, 16
    %v106 = vmul.u32 %v102, %v104
    %v107 = vmul.u32 %v102, %v105
    %v108 = vmul.u32 %v103, %v104
    %v109 = vmul.u32 %v103, %v105
    %v110 = vshll.u32 %v107, 16
    %v111 = vshrl.u32 %v107, 16
    %v112 = vshll.u32 %v108, 16
    %v113 = vshrl.u32 %v108, 16
    %vm114 = vc.u32 %v106, %v110
    %v115 = vsel %vm114, 1, 0
    %v116 = vadd.s32 %v106, %v110
    %v117 = vadd.s32 %v109, %v115
    %vm118 = vc.u32 %v116, %v112
    %v119 = vsel %vm118, 1, 0
    %v120 = vadd.s32 %v116, %v112
    %v121 = vadd.s32 %v117, %v119
    %v122 = vadd.s32 %v121, %v111
    %v123 = vadd.s32 %v122, %v113
    %v124 = vand.u32 %v101, 65535
    %v125 = vshrl.u32 %v101, 16
    %v126 = vand.u32 %v96, 65535
    %v127 = vshrl.u32 %v96, 16
    %v128 = vmul.u32 %v124, %v126
    %v129 = vmul.u32 %v124, %v127
    %v130 = vmul.u32 %v125, %v126
    %v131 = vmul.u32 %v125, %v127
    %v132 = vshll.u32 %v129, 16
    %v133 = vshrl.u32 %v129, 16
    %v134 = vshll.u32 %v130, 16
    %v135 = vshrl.u32 %v130, 16
    %vm136 = vc.u32 %v128, %v132
    %v137 = vsel %vm136, 1, 0
    %v138 = vadd.s32 %v128, %v132
    %v139 = vadd.s32 %v131, %v137
    %vm140 = vc.u32 %v138, %v134
    %v141 = vsel %vm140, 1, 0
    %v142 = vadd.s32 %v138, %v134
    %v143 = vadd.s32 %v139, %v141
    %v144 = vadd.s32 %v143, %v133
    %v145 = vadd.s32 %v144, %v135
    %v146 = vmul.u32 %v101, %v92
    %v147 = vadd.s32 %v123, %v142
    %vm148 = vc.u32 %v123, %v142
    %v149 = vadd.s32 %v145, 1
    %v150 = vsel %vm148, %v149, %v145
    %v151 = vadd.s32 %v146, %v150
    %v152 = vadd.s32 %v151, 536870912
    %v153 = vshrl.u32 %v152, 30
    %v154 = vshll.u32 %v153, 30
    %v155 = vsub.s32 %v151, %v154
    %vm156 = vcmp.lt.s32.totalorder %v155, 0
    %v157 = vsub.s32 0, %v155
    %v158 = vsel %vm156, %v157, %v155
    %v159 = vclz %v158
    %v160 = vsub.s32 %v159, 2
    %vm161 = vcmp.gt.s32.totalorder 0, %v160
    %v162 = vsel %vm161, 0, %v160
    %v163 = vsub.s32 32, %v162
    %v164 = vshll.u32 %v155, %v162
    %v165 = vshrl.u32 %v147, %v163
    %v166 = vor.u32 %v164, %v165
    %v167 = vsub.s32 4294967266, %v162
    %v168 = vadd.s32 %v167, 127
    %v169 = vshll.u32 %v168, 23
    %v170 = vor.u32 4788187, %v169
    %v171 = vand.u32 2147483647, %v170
    %v173 = vcvt.s32.f32 %v166
    %v174 = vmul.f32 %v173, %v171
    %v175 = vxor.u32 %v174, 2147483648
    %v176 = vsel %vm55, %v175, %v174
    %v177 = vsub.s32 4, %v153
    %v178 = vsel %vm55, %v177, %v153
    %v179 = vsel %vm54, %v50, %v176
    %v180 = vsel %vm54, 0, %v178
    %v181 = vmul.f32 %v179, %v179
    %v182 = vmul.f32 %v181, -0.001358992
    %v183 = vadd.f32 %v182, 0.041655596
    %v184 = vmul.f32 %v181, %v183
    %v185 = vadd.f32 %v184, -0.4999988
    %v186 = vmul.f32 %v181, %v185
    %v187 = vadd.f32 1.0, %v186
    %v188 = vmul.f32 %v179, %v179
    %v189 = vmul.f32 %v188, -0.00019511016
    %v190 = vadd.f32 %v189, 0.008332121
    %v191 = vmul.f32 %v188, %v190
    %v192 = vadd.f32 %v191, -0.16666654
    %v193 = vmul.f32 %v188, %v192
    %v194 = vadd.f32 %v193, 1.0
    %v195 = vmul.f32 %v194, %v179
    %vm196 = vweird.f32 %v50
    %v197 = vadd.s32 %v180, 3
    %v198 = vand.u32 %v197, 3
    %vm199 = vcmp.lt.s32.totalorder %v198, 2
    %vm200 = vcmp.eq.s32.totalorder %v198, 0
    %v201 = vxor.u32 %v195, 2147483648
    %v202 = vsel %vm200, %v187, %v201
    %vm203 = vcmp.eq.s32.totalorder %v198, 2
    %v204 = vxor.u32 %v187, 2147483648
    %v205 = vsel %vm203, %v204, %v195
    %v206 = vsel %vm199, %v202, %v205
    %v207 = vsel %vm196, nan, %v206
    %v208 = vmul.f32 %v52, %v207
    %v209 = vld [vmem:[#allocation5] sm:$0xff]
    %v211 = vperm.slane %v208, 0
    %v212 = vperm.slane %v208, 1
    %v213 = vperm.slane %v208, 2
    %v214 = vperm.slane %v208, 3
    %v215 = vrot.slane %v212, 6
    %v216 = vrot.slane %v213, 4
    %v217 = vrot.slane %v214, 2
    %vm218 = vcmask 1041408
    %v219 = vsel %vm218, %v211, %v215
    %vm220 = vcmask 1045508
    %v221 = vsel %vm220, %v216, %v217
    %vm222 = vcmask 1043456
    %v223 = vsel %vm222, %v219, %v221
    %v225 = vadd.f32 %v209, %v223
    %226 = vst [vmem:[#allocation7] sm:$0xff] %v225
    // Predicated region
    $region18: #{tpu_custom_call.1} parent=1 // pred_check
      _
    $region19: #{tpu_custom_call.1} parent=1 // pred_check_branch
      %228 = sbr.rel (0) target = $region21
    $region20: #{tpu_custom_call.1} parent=1 // pred_region
      %230 = vsyncadd [#allocation4], 0
      %s232 = sshll.u32 [#allocation7], 4
      %s233 = int_to_ptr.vmem [resolvable:$true] %s232
      %s234 = sshll.u32 %s2, 4
      %s235 = int_to_ptr.hbm [resolvable:$true] %s234
      %237 = dma.vmem_to_hbm [thread:$0]  %s233, 128, %s235, [#allocation4]
    $region21: #{tpu_custom_call.1} parent=1 // pred_fallthru
      _
    // Predicated region
    $region22: #{tpu_custom_call.1} parent=1 // pred_check
      _
    $region23: #{tpu_custom_call.1} parent=1 // pred_check_branch
      %239 = sbr.rel (0) target = $region25
    $region24: #{tpu_custom_call.1} parent=1 // pred_region
      %241 = dma.done [#allocation4], 128
    $region25: #{tpu_custom_call.1} parent=1 // pred_fallthru
      _
    %242 = vsyncpa [#allocation3], 1
    %243 = vsyncpa [#allocation6], 1
    %244 = vsyncpa [#allocation4], 1

</llo_original>
